<compile_context>
chip_gen: v6e
topology: v6e:2x2x1
jax: 0.10.0
libtpu: 0.0.40
codegen_flags: <defaults>
</compile_context>

<pallas_src>
import numpy as np
import jax
import jax.numpy as jnp
from jax.experimental import pallas as pl
from jax.experimental.pallas import tpu as pltpu

EPS = 1e-5
NEG_SLOPE = 0.01
KSIZE = 3          # 3x3 conv, stride 1, padding 1
ALIGN = 8          # f32 sublane tile


def _conv_block_kernel(x_ref, w1_ref, w2_ref, g1_ref, b1_ref, g2_ref, b2_ref,
                       fold_ref, unfold_ref, out_ref, s1_ref, s2_ref):
    # x_ref     : (N, H, W*Cin)            lane-dense input, lanes = (w, cin)
    # w1_ref    : (3*W*Cin,  W*Cout)       kh-concatenated lowered conv1 weights
    # w2_ref    : (3*W*Cout, W*Cout)       kh-concatenated lowered conv2 weights
    # g*/b*     : (1, Cout)                BN affine params
    # fold_ref  : (W*Cout, Cout)           lane -> channel summation matrix
    # unfold_ref: (Cout, W*Cout)           channel -> lane broadcast matrix
    # out_ref   : (N*H, W*Cout)            lane-dense output slab
    # s1_ref    : (N, 2*ALIGN+H, 3*W*Cin)  im2row slab scratch for conv1
    # s2_ref    : (N, 2*ALIGN+H, 3*W*Cout) im2row slab scratch for conv2
    N, H, WCin = x_ref.shape
    NH, WCout = out_ref.shape
    Cout = g1_ref.shape[1]
    W = WCout // Cout
    M = float(N * H * W)                   # elements per channel for BN stats

    def im2row(src, dst_ref, lanes):
        """Build the (N*H, 3*lanes) kh-concatenated conv LHS; H padding done here."""
        # Sublane-aligned 8-row, full-lane zero bands covering the halo taps of the
        # read window [ALIGN, ALIGN+H); the shifted data stores below overwrite the
        # interior, leaving exactly the out-of-range taps zero.
        zeros = jnp.zeros((N, ALIGN, 3 * lanes), jnp.float32)
        dst_ref[:, ALIGN:2 * ALIGN, :] = zeros            # rows [ALIGN, ALIGN+8)
        dst_ref[:, H:ALIGN + H, :] = zeros                 # rows [ALIGN+H-8, ALIGN+H)
        # Tap kh of output row r reads input row (r + kh - 1): place the activation
        # rows at sublane offset ALIGN + 1 - kh in lane group kh.
        for kh in range(KSIZE):
            r0 = ALIGN + 1 - kh
            dst_ref[:, r0:r0 + H, kh * lanes:(kh + 1) * lanes] = src
        # Aligned, full-lane read of the window; leading-dim collapse is layout-free.
        return dst_ref[:, ALIGN:ALIGN + H, :].reshape(NH, 3 * lanes)

    def batchnorm(y, g_ref, b_ref):
        # Single-pass stats (sum, sum-of-squares), folded lane->channel on the MXU as
        # one stacked (2, W*Cout) matmul, broadcast back with one (2, Cout) matmul.
        s = jnp.sum(y, axis=0, keepdims=True)                     # (1, W*Cout)
        q = jnp.sum(y * y, axis=0, keepdims=True)                 # (1, W*Cout)
        stats = jnp.concatenate([s, q], axis=0)                   # (2, W*Cout)
        ch = jnp.dot(stats, fold_ref[...],
                     preferred_element_type=jnp.float32)          # (2, Cout)
        mean = ch[0:1] * (1.0 / M)
        var = jnp.maximum(ch[1:2] * (1.0 / M) - mean * mean, 0.0)  # biased, clamped
        scale_c = g_ref[...] * jax.lax.rsqrt(var + EPS)           # (1, Cout)
        shift_c = b_ref[...] - mean * scale_c
        aff = jnp.concatenate([scale_c, shift_c], axis=0)         # (2, Cout)
        lane_aff = jnp.dot(aff, unfold_ref[...],
                           preferred_element_type=jnp.float32)    # (2, W*Cout)
        return y * lane_aff[0:1] + lane_aff[1:2]                  # lane-dense VPU work

    # ---- conv1 + BN1: single MXU push, contraction K = 3*W*Cin ----
    lhs1 = im2row(x_ref[...], s1_ref, WCin)
    y1 = jnp.dot(lhs1, w1_ref[...], preferred_element_type=jnp.float32)
    y1 = batchnorm(y1, g1_ref, b1_ref)

    # ---- conv2 + BN2: single MXU push, contraction K = 3*W*Cout ----
    lhs2 = im2row(y1.reshape(N, H, WCout), s2_ref, WCout)
    y2 = jnp.dot(lhs2, w2_ref[...], preferred_element_type=jnp.float32)
    y2 = batchnorm(y2, g2_ref, b2_ref)

    # ---- LeakyReLU + lane-dense store ----
    out_ref[...] = jnp.where(y2 >= 0, y2, NEG_SLOPE * y2)


def _lower_conv_weights(w_oihw, W):
    """Fold kw taps + W-padding into one dense matmul matrix (3*W*Cin, W*Cout).

    Row index = kh*(W*Cin) + wi*Cin + ci, column = wo*Cout + co, value
    w[co, ci, kh, wi - wo + 1] when the kw tap is in range, else 0.  Out-of-range wi
    (the W halo) never appears -> implicit zero padding along W.  Pure weight
    preprocessing, done once in the wrapper.
    """
    Cout, Cin, K, _ = w_oihw.shape
    kw_idx = np.arange(K)[:, None, None]
    wi_idx = np.arange(W)[None, :, None]
    wo_idx = np.arange(W)[None, None, :]
    sel = (wi_idx == wo_idx + kw_idx - 1).astype(np.float32)            # (K, Win, Wout)
    t = jnp.einsum('kvu,oihk->hviuo', sel, w_oihw.astype(jnp.float32))  # (kh,wi,ci,wo,co)
    return t.reshape(K * W * Cin, W * Cout)


def conv_block_nhwc(x_nhwc, w1_oihw, g1, b1, w2_oihw, g2, b2):
    """ConvBlock forward, NHWC / lane-dense boundary (no transposes, no jnp.pad)."""
    N, H, W, Cin = x_nhwc.shape
    Cout = w1_oihw.shape[0]
    WCin, WCout = W * Cin, W * Cout
    assert H % ALIGN == 0, "kernel assumes H is a multiple of the 8-row sublane tile"

    # (N,H,W,Cin) -> (N,H,W*Cin) is a free reshape (contiguous trailing dims).
    x = x_nhwc.astype(jnp.float32).reshape(N, H, WCin)

    w1cat = _lower_conv_weights(w1_oihw, W)      # (3*W*Cin,  W*Cout)
    w2cat = _lower_conv_weights(w2_oihw, W)      # (3*W*Cout, W*Cout)

    fold_np = np.tile(np.eye(Cout, dtype=np.float32), (W, 1))   # (W*Cout, Cout)
    fold = jnp.asarray(fold_np)
    unfold = jnp.asarray(np.ascontiguousarray(fold_np.T))       # (Cout, W*Cout)

    flops = 2 * (N * H) * (KSIZE * WCin * WCout + KSIZE * WCout * WCout)
    bytes_accessed = 4 * (x.size + w1cat.size + w2cat.size + N * H * WCout + 4 * Cout)

    vmem = pltpu.MemorySpace.VMEM
    out2d = pl.pallas_call(
        _conv_block_kernel,
        out_shape=jax.ShapeDtypeStruct((N * H, WCout), jnp.float32),
        in_specs=[pl.BlockSpec(memory_space=vmem)] * 9,
        out_specs=pl.BlockSpec(memory_space=vmem),
        scratch_shapes=[pltpu.VMEM((N, 2 * ALIGN + H, 3 * WCin), jnp.float32),
                        pltpu.VMEM((N, 2 * ALIGN + H, 3 * WCout), jnp.float32)],
        cost_estimate=pl.CostEstimate(flops=int(flops),
                                      transcendentals=2 * Cout,
                                      bytes_accessed=int(bytes_accessed)),
    )(x, w1cat, w2cat,
      g1.reshape(1, Cout).astype(jnp.float32),
      b1.reshape(1, Cout).astype(jnp.float32),
      g2.reshape(1, Cout).astype(jnp.float32),
      b2.reshape(1, Cout).astype(jnp.float32),
      fold, unfold)

    return out2d.reshape(N, H, W, Cout)


def conv_block(x_nchw, w1_oihw, g1, b1, w2_oihw, g2, b2):
    """PyTorch-layout (NCHW) adapter around the NHWC kernel entry point.

    TODO(synk): in a real pipeline keep activations NHWC end-to-end (or fold these two
    transposes into the producer/consumer ops); they are full HBM relayout passes.
    """
    x_nhwc = jnp.transpose(x_nchw, (0, 2, 3, 1))
    y_nhwc = conv_block_nhwc(x_nhwc, w1_oihw, g1, b1, w2_oihw, g2, b2)
    return jnp.transpose(y_nhwc, (0, 3, 1, 2))


def conv_block_reference(x, w1, g1, b1, w2, g2, b2):
    """Pure-JAX reference mirroring the PyTorch forward (NCHW, training-mode BN)."""
    def conv(x, w):
        return jax.lax.conv_general_dilated(
            x, w, window_strides=(1, 1), padding=((1, 1), (1, 1)),
            dimension_numbers=("NCHW", "OIHW", "NCHW"))

    def bn(x, g, b):
        mean = jnp.mean(x, axis=(0, 2, 3), keepdims=True)
        var = jnp.mean((x - mean) ** 2, axis=(0, 2, 3), keepdims=True)
        return ((x - mean) * jax.lax.rsqrt(var + EPS)
                * g.reshape(1, -1, 1, 1) + b.reshape(1, -1, 1, 1))

    y = bn(conv(x, w1), g1, b1)
    y = bn(conv(y, w2), g2, b2)
    return jnp.where(y >= 0, y, NEG_SLOPE * y)


if __name__ == "__main__":
    N, Cin, Cout, H, W, K = 2, 4, 8, 16, 16, 3

    key = jax.random.PRNGKey(0)
    kx, kw1, kw2, kg1, kb1, kg2, kb2 = jax.random.split(key, 7)

    x = jax.random.normal(kx, (N, Cin, H, W), jnp.float32)
    w1 = jax.random.normal(kw1, (Cout, Cin, K, K), jnp.float32) * 0.1
    w2 = jax.random.normal(kw2, (Cout, Cout, K, K), jnp.float32) * 0.1
    g1 = 1.0 + 0.1 * jax.random.normal(kg1, (Cout,), jnp.float32)
    b1 = 0.1 * jax.random.normal(kb1, (Cout,), jnp.float32)
    g2 = 1.0 + 0.1 * jax.random.normal(kg2, (Cout,), jnp.float32)
    b2 = 0.1 * jax.random.normal(kb2, (Cout,), jnp.float32)

    y = jax.block_until_ready(conv_block(x, w1, g1, b1, w2, g2, b2))
    y_ref = jax.block_until_ready(conv_block_reference(x, w1, g1, b1, w2, g2, b2))

    assert y.shape == (N, Cout, H, W)
    assert jnp.allclose(y, y_ref, atol=2e-3, rtol=2e-3), \
        float(jnp.max(jnp.abs(y - y_ref)))

    print("KERNEL_OK")
</pallas_src>

<mosaic_0001>
module attributes {stable_mosaic.version = 11 : i64} {
  func.func @_conv_block_kernel(%arg0: memref<2x16x64xf32, #tpu.memory_space<vmem>>, %arg1: memref<192x128xf32, #tpu.memory_space<vmem>>, %arg2: memref<384x128xf32, #tpu.memory_space<vmem>>, %arg3: memref<1x8xf32, #tpu.memory_space<vmem>>, %arg4: memref<1x8xf32, #tpu.memory_space<vmem>>, %arg5: memref<1x8xf32, #tpu.memory_space<vmem>>, %arg6: memref<1x8xf32, #tpu.memory_space<vmem>>, %arg7: memref<128x8xf32, #tpu.memory_space<vmem>>, %arg8: memref<8x128xf32, #tpu.memory_space<vmem>>, %arg9: memref<32x128xf32, #tpu.memory_space<vmem>>, %arg10: memref<2x32x192xf32, #tpu.memory_space<vmem>>, %arg11: memref<2x32x384xf32, #tpu.memory_space<vmem>>) attributes {dimension_semantics = [], scalar_prefetch = 0 : i64, scratch_operands = 2 : i64, tpu.core_type = #tpu.core_type<tc>} {
    %c0 = arith.constant 0 : index
    %c0_0 = arith.constant 0 : index
    %c0_1 = arith.constant 0 : index
    %0 = vector.load %arg0[%c0, %c0_0, %c0_1] : memref<2x16x64xf32, #tpu.memory_space<vmem>>, vector<2x16x64xf32>
    %cst = arith.constant 0.000000e+00 : f32
    %1 = vector.broadcast %cst : f32 to vector<2x8x192xf32>
    %c0_2 = arith.constant 0 : index
    %c8 = arith.constant 8 : index
    %c0_3 = arith.constant 0 : index
    %2 = vector.load %arg10[%c0_2, %c8, %c0_3] : memref<2x32x192xf32, #tpu.memory_space<vmem>>, vector<2x8x192xf32>
    tpu.vector_store %arg10[%c0_2, %c8, %c0_3], %1 {strides = array<i32>} : memref<2x32x192xf32, #tpu.memory_space<vmem>>, vector<2x8x192xf32>,
    %c0_4 = arith.constant 0 : index
    %c16 = arith.constant 16 : index
    %c0_5 = arith.constant 0 : index
    %3 = vector.load %arg10[%c0_4, %c16, %c0_5] : memref<2x32x192xf32, #tpu.memory_space<vmem>>, vector<2x8x192xf32>
    tpu.vector_store %arg10[%c0_4, %c16, %c0_5], %1 {strides = array<i32>} : memref<2x32x192xf32, #tpu.memory_space<vmem>>, vector<2x8x192xf32>,
    %c0_6 = arith.constant 0 : index
    %c9 = arith.constant 9 : index
    %c0_7 = arith.constant 0 : index
    %4 = vector.load %arg10[%c0_6, %c9, %c0_7] : memref<2x32x192xf32, #tpu.memory_space<vmem>>, vector<2x16x64xf32>
    tpu.vector_store %arg10[%c0_6, %c9, %c0_7], %0 {strides = array<i32>} : memref<2x32x192xf32, #tpu.memory_space<vmem>>, vector<2x16x64xf32>,
    %c0_8 = arith.constant 0 : index
    %c8_9 = arith.constant 8 : index
    %c64 = arith.constant 64 : index
    %5 = vector.load %arg10[%c0_8, %c8_9, %c64] : memref<2x32x192xf32, #tpu.memory_space<vmem>>, vector<2x16x64xf32>
    tpu.vector_store %arg10[%c0_8, %c8_9, %c64], %0 {strides = array<i32>} : memref<2x32x192xf32, #tpu.memory_space<vmem>>, vector<2x16x64xf32>,
    %c0_10 = arith.constant 0 : index
    %c7 = arith.constant 7 : index
    %c128 = arith.constant 128 : index
    %6 = vector.load %arg10[%c0_10, %c7, %c128] : memref<2x32x192xf32, #tpu.memory_space<vmem>>, vector<2x16x64xf32>
    tpu.vector_store %arg10[%c0_10, %c7, %c128], %0 {strides = array<i32>} : memref<2x32x192xf32, #tpu.memory_space<vmem>>, vector<2x16x64xf32>,
    %c0_11 = arith.constant 0 : index
    %c8_12 = arith.constant 8 : index
    %c0_13 = arith.constant 0 : index
    %7 = vector.load %arg10[%c0_11, %c8_12, %c0_13] : memref<2x32x192xf32, #tpu.memory_space<vmem>>, vector<2x16x192xf32>
    %8 = vector.shape_cast %7 : vector<2x16x192xf32> to vector<32x192xf32>
    %c0_14 = arith.constant 0 : index
    %c0_15 = arith.constant 0 : index
    %9 = vector.load %arg1[%c0_14, %c0_15] : memref<192x128xf32, #tpu.memory_space<vmem>>, vector<192x128xf32>
    %cst_16 = arith.constant dense<0.000000e+00> : vector<32x128xf32>
    %10 = tpu.matmul %8, %9, %cst_16 {dimension_numbers = #tpu.dot_dimension_numbers<[1], [0], [0], [1], [0, 0, 1, 1], [], []>} : vector<32x192xf32>, vector<192x128xf32>, vector<32x128xf32> -> vector<32x128xf32>
    %cst_17 = arith.constant dense<0.000000e+00> : vector<128xf32>
    %11 = vector.multi_reduction <add>, %10, %cst_17 [0] : vector<32x128xf32> to vector<128xf32>
    %12 = vector.shape_cast %11 : vector<128xf32> to vector<1x128xf32>
    %13 = arith.mulf %10, %10 : vector<32x128xf32>
    %cst_18 = arith.constant dense<0.000000e+00> : vector<128xf32>
    %14 = vector.multi_reduction <add>, %13, %cst_18 [0] : vector<32x128xf32> to vector<128xf32>
    %15 = vector.shape_cast %14 : vector<128xf32> to vector<1x128xf32>
    %16 = tpu.concatenate %12, %15 in 0 : vector<1x128xf32>, vector<1x128xf32> -> vector<2x128xf32>
    %c0_19 = arith.constant 0 : index
    %c0_20 = arith.constant 0 : index
    %17 = vector.load %arg7[%c0_19, %c0_20] : memref<128x8xf32, #tpu.memory_space<vmem>>, vector<128x8xf32>
    %cst_21 = arith.constant dense<0.000000e+00> : vector<2x8xf32>
    %18 = tpu.matmul %16, %17, %cst_21 {dimension_numbers = #tpu.dot_dimension_numbers<[1], [0], [0], [1], [0, 0, 1, 1], [], []>} : vector<2x128xf32>, vector<128x8xf32>, vector<2x8xf32> -> vector<2x8xf32>
    %19 = vector.extract_strided_slice %18 {offsets = [0, 0], sizes = [1, 8], strides = [1, 1]} : vector<2x8xf32> to vector<1x8xf32>
    %cst_22 = arith.constant 0.001953125 : f32
    %20 = vector.broadcast %cst_22 : f32 to vector<1x8xf32>
    %21 = arith.mulf %19, %20 : vector<1x8xf32>
    %22 = vector.extract_strided_slice %18 {offsets = [1, 0], sizes = [1, 8], strides = [1, 1]} : vector<2x8xf32> to vector<1x8xf32>
    %cst_23 = arith.constant 0.001953125 : f32
    %23 = vector.broadcast %cst_23 : f32 to vector<1x8xf32>
    %24 = arith.mulf %22, %23 : vector<1x8xf32>
    %25 = arith.mulf %21, %21 : vector<1x8xf32>
    %26 = arith.subf %24, %25 : vector<1x8xf32>
    %cst_24 = arith.constant 0.000000e+00 : f32
    %27 = vector.broadcast %cst_24 : f32 to vector<1x8xf32>
    %28 = arith.maximumf %26, %27 : vector<1x8xf32>
    %c0_25 = arith.constant 0 : index
    %c0_26 = arith.constant 0 : index
    %29 = vector.load %arg3[%c0_25, %c0_26] : memref<1x8xf32, #tpu.memory_space<vmem>>, vector<1x8xf32>
    %cst_27 = arith.constant 9.99999974E-6 : f32
    %30 = vector.broadcast %cst_27 : f32 to vector<1x8xf32>
    %31 = arith.addf %28, %30 : vector<1x8xf32>
    %32 = math.rsqrt %31 : vector<1x8xf32>
    %33 = arith.mulf %29, %32 : vector<1x8xf32>
    %c0_28 = arith.constant 0 : index
    %c0_29 = arith.constant 0 : index
    %34 = vector.load %arg4[%c0_28, %c0_29] : memref<1x8xf32, #tpu.memory_space<vmem>>, vector<1x8xf32>
    %35 = arith.mulf %21, %33 : vector<1x8xf32>
    %36 = arith.subf %34, %35 : vector<1x8xf32>
    %37 = tpu.concatenate %33, %36 in 0 : vector<1x8xf32>, vector<1x8xf32> -> vector<2x8xf32>
    %c0_30 = arith.constant 0 : index
    %c0_31 = arith.constant 0 : index
    %38 = vector.load %arg8[%c0_30, %c0_31] : memref<8x128xf32, #tpu.memory_space<vmem>>, vector<8x128xf32>
    %cst_32 = arith.constant dense<0.000000e+00> : vector<2x128xf32>
    %39 = tpu.matmul %37, %38, %cst_32 {dimension_numbers = #tpu.dot_dimension_numbers<[1], [0], [0], [1], [0, 0, 1, 1], [], []>} : vector<2x8xf32>, vector<8x128xf32>, vector<2x128xf32> -> vector<2x128xf32>
    %40 = vector.extract_strided_slice %39 {offsets = [0, 0], sizes = [1, 128], strides = [1, 1]} : vector<2x128xf32> to vector<1x128xf32>
    %41 = vector.broadcast %40 : vector<1x128xf32> to vector<32x128xf32>
    %42 = arith.mulf %10, %41 : vector<32x128xf32>
    %43 = vector.extract_strided_slice %39 {offsets = [1, 0], sizes = [1, 128], strides = [1, 1]} : vector<2x128xf32> to vector<1x128xf32>
    %44 = vector.broadcast %43 : vector<1x128xf32> to vector<32x128xf32>
    %45 = arith.addf %42, %44 : vector<32x128xf32>
    %46 = vector.shape_cast %45 : vector<32x128xf32> to vector<2x16x128xf32>
    %cst_33 = arith.constant 0.000000e+00 : f32
    %47 = vector.broadcast %cst_33 : f32 to vector<2x8x384xf32>
    %c0_34 = arith.constant 0 : index
    %c8_35 = arith.constant 8 : index
    %c0_36 = arith.constant 0 : index
    %48 = vector.load %arg11[%c0_34, %c8_35, %c0_36] : memref<2x32x384xf32, #tpu.memory_space<vmem>>, vector<2x8x384xf32>
    tpu.vector_store %arg11[%c0_34, %c8_35, %c0_36], %47 {strides = array<i32>} : memref<2x32x384xf32, #tpu.memory_space<vmem>>, vector<2x8x384xf32>,
    %c0_37 = arith.constant 0 : index
    %c16_38 = arith.constant 16 : index
    %c0_39 = arith.constant 0 : index
    %49 = vector.load %arg11[%c0_37, %c16_38, %c0_39] : memref<2x32x384xf32, #tpu.memory_space<vmem>>, vector<2x8x384xf32>
    tpu.vector_store %arg11[%c0_37, %c16_38, %c0_39], %47 {strides = array<i32>} : memref<2x32x384xf32, #tpu.memory_space<vmem>>, vector<2x8x384xf32>,
    %c0_40 = arith.constant 0 : index
    %c9_41 = arith.constant 9 : index
    %c0_42 = arith.constant 0 : index
    %50 = vector.load %arg11[%c0_40, %c9_41, %c0_42] : memref<2x32x384xf32, #tpu.memory_space<vmem>>, vector<2x16x128xf32>
    tpu.vector_store %arg11[%c0_40, %c9_41, %c0_42], %46 {strides = array<i32>} : memref<2x32x384xf32, #tpu.memory_space<vmem>>, vector<2x16x128xf32>,
    %c0_43 = arith.constant 0 : index
    %c8_44 = arith.constant 8 : index
    %c128_45 = arith.constant 128 : index
    %51 = vector.load %arg11[%c0_43, %c8_44, %c128_45] : memref<2x32x384xf32, #tpu.memory_space<vmem>>, vector<2x16x128xf32>
    tpu.vector_store %arg11[%c0_43, %c8_44, %c128_45], %46 {strides = array<i32>} : memref<2x32x384xf32, #tpu.memory_space<vmem>>, vector<2x16x128xf32>,
    %c0_46 = arith.constant 0 : index
    %c7_47 = arith.constant 7 : index
    %c256 = arith.constant 256 : index
    %52 = vector.load %arg11[%c0_46, %c7_47, %c256] : memref<2x32x384xf32, #tpu.memory_space<vmem>>, vector<2x16x128xf32>
    tpu.vector_store %arg11[%c0_46, %c7_47, %c256], %46 {strides = array<i32>} : memref<2x32x384xf32, #tpu.memory_space<vmem>>, vector<2x16x128xf32>,
    %c0_48 = arith.constant 0 : index
    %c8_49 = arith.constant 8 : index
    %c0_50 = arith.constant 0 : index
    %53 = vector.load %arg11[%c0_48, %c8_49, %c0_50] : memref<2x32x384xf32, #tpu.memory_space<vmem>>, vector<2x16x384xf32>
    %54 = vector.shape_cast %53 : vector<2x16x384xf32> to vector<32x384xf32>
    %c0_51 = arith.constant 0 : index
    %c0_52 = arith.constant 0 : index
    %55 = vector.load %arg2[%c0_51, %c0_52] : memref<384x128xf32, #tpu.memory_space<vmem>>, vector<384x128xf32>
    %cst_53 = arith.constant dense<0.000000e+00> : vector<32x128xf32>
    %56 = tpu.matmul %54, %55, %cst_53 {dimension_numbers = #tpu.dot_dimension_numbers<[1], [0], [0], [1], [0, 0, 1, 1], [], []>} : vector<32x384xf32>, vector<384x128xf32>, vector<32x128xf32> -> vector<32x128xf32>
    %cst_54 = arith.constant dense<0.000000e+00> : vector<128xf32>
    %57 = vector.multi_reduction <add>, %56, %cst_54 [0] : vector<32x128xf32> to vector<128xf32>
    %58 = vector.shape_cast %57 : vector<128xf32> to vector<1x128xf32>
    %59 = arith.mulf %56, %56 : vector<32x128xf32>
    %cst_55 = arith.constant dense<0.000000e+00> : vector<128xf32>
    %60 = vector.multi_reduction <add>, %59, %cst_55 [0] : vector<32x128xf32> to vector<128xf32>
    %61 = vector.shape_cast %60 : vector<128xf32> to vector<1x128xf32>
    %62 = tpu.concatenate %58, %61 in 0 : vector<1x128xf32>, vector<1x128xf32> -> vector<2x128xf32>
    %c0_56 = arith.constant 0 : index
    %c0_57 = arith.constant 0 : index
    %63 = vector.load %arg7[%c0_56, %c0_57] : memref<128x8xf32, #tpu.memory_space<vmem>>, vector<128x8xf32>
    %cst_58 = arith.constant dense<0.000000e+00> : vector<2x8xf32>
    %64 = tpu.matmul %62, %63, %cst_58 {dimension_numbers = #tpu.dot_dimension_numbers<[1], [0], [0], [1], [0, 0, 1, 1], [], []>} : vector<2x128xf32>, vector<128x8xf32>, vector<2x8xf32> -> vector<2x8xf32>
    %65 = vector.extract_strided_slice %64 {offsets = [0, 0], sizes = [1, 8], strides = [1, 1]} : vector<2x8xf32> to vector<1x8xf32>
    %cst_59 = arith.constant 0.001953125 : f32
    %66 = vector.broadcast %cst_59 : f32 to vector<1x8xf32>
    %67 = arith.mulf %65, %66 : vector<1x8xf32>
    %68 = vector.extract_strided_slice %64 {offsets = [1, 0], sizes = [1, 8], strides = [1, 1]} : vector<2x8xf32> to vector<1x8xf32>
    %cst_60 = arith.constant 0.001953125 : f32
    %69 = vector.broadcast %cst_60 : f32 to vector<1x8xf32>
    %70 = arith.mulf %68, %69 : vector<1x8xf32>
    %71 = arith.mulf %67, %67 : vector<1x8xf32>
    %72 = arith.subf %70, %71 : vector<1x8xf32>
    %cst_61 = arith.constant 0.000000e+00 : f32
    %73 = vector.broadcast %cst_61 : f32 to vector<1x8xf32>
    %74 = arith.maximumf %72, %73 : vector<1x8xf32>
    %c0_62 = arith.constant 0 : index
    %c0_63 = arith.constant 0 : index
    %75 = vector.load %arg5[%c0_62, %c0_63] : memref<1x8xf32, #tpu.memory_space<vmem>>, vector<1x8xf32>
    %cst_64 = arith.constant 9.99999974E-6 : f32
    %76 = vector.broadcast %cst_64 : f32 to vector<1x8xf32>
    %77 = arith.addf %74, %76 : vector<1x8xf32>
    %78 = math.rsqrt %77 : vector<1x8xf32>
    %79 = arith.mulf %75, %78 : vector<1x8xf32>
    %c0_65 = arith.constant 0 : index
    %c0_66 = arith.constant 0 : index
    %80 = vector.load %arg6[%c0_65, %c0_66] : memref<1x8xf32, #tpu.memory_space<vmem>>, vector<1x8xf32>
    %81 = arith.mulf %67, %79 : vector<1x8xf32>
    %82 = arith.subf %80, %81 : vector<1x8xf32>
    %83 = tpu.concatenate %79, %82 in 0 : vector<1x8xf32>, vector<1x8xf32> -> vector<2x8xf32>
    %c0_67 = arith.constant 0 : index
    %c0_68 = arith.constant 0 : index
    %84 = vector.load %arg8[%c0_67, %c0_68] : memref<8x128xf32, #tpu.memory_space<vmem>>, vector<8x128xf32>
    %cst_69 = arith.constant dense<0.000000e+00> : vector<2x128xf32>
    %85 = tpu.matmul %83, %84, %cst_69 {dimension_numbers = #tpu.dot_dimension_numbers<[1], [0], [0], [1], [0, 0, 1, 1], [], []>} : vector<2x8xf32>, vector<8x128xf32>, vector<2x128xf32> -> vector<2x128xf32>
    %86 = vector.extract_strided_slice %85 {offsets = [0, 0], sizes = [1, 128], strides = [1, 1]} : vector<2x128xf32> to vector<1x128xf32>
    %87 = vector.broadcast %86 : vector<1x128xf32> to vector<32x128xf32>
    %88 = arith.mulf %56, %87 : vector<32x128xf32>
    %89 = vector.extract_strided_slice %85 {offsets = [1, 0], sizes = [1, 128], strides = [1, 1]} : vector<2x128xf32> to vector<1x128xf32>
    %90 = vector.broadcast %89 : vector<1x128xf32> to vector<32x128xf32>
    %91 = arith.addf %88, %90 : vector<32x128xf32>
    %cst_70 = arith.constant 0.000000e+00 : f32
    %92 = vector.broadcast %cst_70 : f32 to vector<32x128xf32>
    %93 = arith.cmpf oge, %91, %92 : vector<32x128xf32>
    %cst_71 = arith.constant 0.00999999977 : f32
    %94 = vector.broadcast %cst_71 : f32 to vector<32x128xf32>
    %95 = arith.mulf %94, %91 : vector<32x128xf32>
    %96 = arith.select %93, %91, %95 : vector<32x128xi1>, vector<32x128xf32>
    %c0_72 = arith.constant 0 : index
    %c0_73 = arith.constant 0 : index
    %97 = vector.load %arg9[%c0_72, %c0_73] : memref<32x128xf32, #tpu.memory_space<vmem>>, vector<32x128xf32>
    tpu.vector_store %arg9[%c0_72, %c0_73], %96 {strides = array<i32>} : memref<32x128xf32, #tpu.memory_space<vmem>>, vector<32x128xf32>,
    return
  }
}

</mosaic_0001>

<llo_original>
// kernel: tpu_custom_call.1
$region0: #{tpu_custom_call.1}
  #allocation0 [shape = 'u32[]', space=smem, size = 0x4, offset = 0x4, fixed_abs, tag = 'smem constant byte address 0x4 - core index']
  #allocation1 [shape = 'u32[144,128]{1,0:T(1,128)}', space=vmem, size = 0x12000, scoped, tag = 'internal scratch']
  #allocation2 [shape = 'f32[2,32,192]{2,1,0:T(8,128)}', space=vmem, size = 0x10000, scoped, tag = 'scratch operand']
  #allocation3 [shape = 'f32[2,32,384]{2,1,0:T(8,128)}', space=vmem, size = 0x18000, scoped, tag = 'scratch operand']
  %s0 = inlined_call_operand.vmem [shape: f32[2,16,64], index: 0, kind: input, shape index: {}]
  %s1 = inlined_call_operand.hbm [shape: f32[192,128], index: 1, kind: input, shape index: {}]
  %s2 = inlined_call_operand.hbm [shape: f32[384,128], index: 2, kind: input, shape index: {}]
  %s3 = inlined_call_operand.vmem [shape: f32[1,8], index: 3, kind: input, shape index: {}]
  %s4 = inlined_call_operand.vmem [shape: f32[1,8], index: 4, kind: input, shape index: {}]
  %s5 = inlined_call_operand.vmem [shape: f32[1,8], index: 5, kind: input, shape index: {}]
  %s6 = inlined_call_operand.vmem [shape: f32[1,8], index: 6, kind: input, shape index: {}]
  %s7 = inlined_call_operand.vmem [shape: f32[128,8], index: 7, kind: input, shape index: {}]
  %s8 = inlined_call_operand.vmem [shape: f32[8,128], index: 8, kind: input, shape index: {}]
  %s9 = inlined_call_operand.hbm [shape: f32[32,128], index: 9, kind: output, shape index: {}]
  %s10 = sld [smem:[#allocation0]]
  $region54: #{tpu_custom_call.1} parent=0
    _
  %s12 = ssub.s32 1, %s10
  %s13 = scalar_select 0, %s12, %s10
  $region1: #{tpu_custom_call.1} parent=0
    #allocation4 [shape = 'u8[98304]{0}', space=vmem, size = 0x18000, scoped, tag = 'input window, operand 1, single buffered']
    #allocation5 [shape = 's32[1]{0}', space=sflag, size = 0x4, scoped, tag = 'scoped memory for tpu_custom_call.1']
    #allocation6 [shape = 's32[1]{0}', space=sflag, size = 0x4, scoped, tag = 'scoped memory for tpu_custom_call.1']
    #allocation7 [shape = 'u8[196608]{0}', space=vmem, size = 0x30000, scoped, tag = 'input window, operand 2, single buffered']
    #allocation8 [shape = 's32[1]{0}', space=sflag, size = 0x4, scoped, tag = 'scoped memory for tpu_custom_call.1']
    #allocation9 [shape = 'u8[16384]{0}', space=vmem, size = 0x4000, scoped, tag = 'output window, operand 0, single buffered']
    %14 = vsyncpa [#allocation5], 0
    %15 = vsyncpa [#allocation8], 0
    %16 = vsyncpa [#allocation6], 0
    // Predicated region
    $region2: #{tpu_custom_call.1} parent=1 // pred_check
      _
    $region3: #{tpu_custom_call.1} parent=1 // pred_check_branch
      %18 = sbr.rel (0) target = $region5
    $region4: #{tpu_custom_call.1} parent=1 // pred_region
      _
    $region5: #{tpu_custom_call.1} parent=1 // pred_fallthru
      _
    // Predicated region
    $region6: #{tpu_custom_call.1} parent=1 // pred_check
      _
    $region7: #{tpu_custom_call.1} parent=1 // pred_check_branch
      %20 = sbr.rel (0) target = $region9
    $region8: #{tpu_custom_call.1} parent=1 // pred_region
      %s22 = ssub.s32 3072, 3072
      %23 = vsyncadd [#allocation5], %s22
      %s24 = sshll.u32 [#allocation4], 4
      %s25 = int_to_ptr.vmem [resolvable:$true] %s24
      %30 = dma.hbm_to_vmem [thread:$0]  %s1, 3072, %s25, [#allocation5], 128, 128, 8
    $region9: #{tpu_custom_call.1} parent=1 // pred_fallthru
      _
    // Predicated region
    $region10: #{tpu_custom_call.1} parent=1 // pred_check
      _
    $region11: #{tpu_custom_call.1} parent=1 // pred_check_branch
      %32 = sbr.rel (0) target = $region13
    $region12: #{tpu_custom_call.1} parent=1 // pred_region
      %s34 = ssub.s32 6144, 6144
      %35 = vsyncadd [#allocation8], %s34
      %s36 = sshll.u32 [#allocation7], 4
      %s37 = int_to_ptr.vmem [resolvable:$true] %s36
      %42 = dma.hbm_to_vmem [thread:$0]  %s2, 6144, %s37, [#allocation8], 128, 128, 8
    $region13: #{tpu_custom_call.1} parent=1 // pred_fallthru
      _
    // Predicated region
    $region14: #{tpu_custom_call.1} parent=1 // pred_check
      _
    $region15: #{tpu_custom_call.1} parent=1 // pred_check_branch
      %44 = sbr.rel (0) target = $region17
    $region16: #{tpu_custom_call.1} parent=1 // pred_region
      _
    $region17: #{tpu_custom_call.1} parent=1 // pred_fallthru
      _
    // Predicated region
    $region18: #{tpu_custom_call.1} parent=1 // pred_check
      _
    $region19: #{tpu_custom_call.1} parent=1 // pred_check_branch
      %46 = sbr.rel (0) target = $region21
    $region20: #{tpu_custom_call.1} parent=1 // pred_region
      _
    $region21: #{tpu_custom_call.1} parent=1 // pred_fallthru
      _
    // Predicated region
    $region22: #{tpu_custom_call.1} parent=1 // pred_check
      _
    $region23: #{tpu_custom_call.1} parent=1 // pred_check_branch
      %48 = sbr.rel (0) target = $region25
    $region24: #{tpu_custom_call.1} parent=1 // pred_region
      _
    $region25: #{tpu_custom_call.1} parent=1 // pred_fallthru
      _
    // Predicated region
    $region26: #{tpu_custom_call.1} parent=1 // pred_check
      _
    $region27: #{tpu_custom_call.1} parent=1 // pred_check_branch
      %50 = sbr.rel (0) target = $region29
    $region28: #{tpu_custom_call.1} parent=1 // pred_region
      _
    $region29: #{tpu_custom_call.1} parent=1 // pred_fallthru
      _
    // Predicated region
    $region30: #{tpu_custom_call.1} parent=1 // pred_check
      _
    $region31: #{tpu_custom_call.1} parent=1 // pred_check_branch
      %52 = sbr.rel (0) target = $region33
    $region32: #{tpu_custom_call.1} parent=1 // pred_region
      _
    $region33: #{tpu_custom_call.1} parent=1 // pred_fallthru
      _
    // Predicated region
    $region34: #{tpu_custom_call.1} parent=1 // pred_check
      _
    $region35: #{tpu_custom_call.1} parent=1 // pred_check_branch
      %54 = sbr.rel (0) target = $region37
    $region36: #{tpu_custom_call.1} parent=1 // pred_region
      _
    $region37: #{tpu_custom_call.1} parent=1 // pred_fallthru
      _
    // Predicated region
    $region38: #{tpu_custom_call.1} parent=1 // pred_check
      _
    $region39: #{tpu_custom_call.1} parent=1 // pred_check_branch
      %56 = sbr.rel (0) target = $region41
    $region40: #{tpu_custom_call.1} parent=1 // pred_region
      %57 = dma.done [#allocation5], 3072
    $region41: #{tpu_custom_call.1} parent=1 // pred_fallthru
      _
    // Predicated region
    $region42: #{tpu_custom_call.1} parent=1 // pred_check
      _
    $region43: #{tpu_custom_call.1} parent=1 // pred_check_branch
      %59 = sbr.rel (0) target = $region45
    $region44: #{tpu_custom_call.1} parent=1 // pred_region
      %60 = dma.done [#allocation8], 6144
    $region45: #{tpu_custom_call.1} parent=1 // pred_fallthru
      _
    %v61 = vld [vmem:[%s0] sm:$0xff]
    %v62 = vld [vmem:[%s0 + $0x8] sm:$0xff]
    %v63 = vld [vmem:[%s0 + $0x10] sm:$0xff]
    %v64 = vld [vmem:[%s0 + $0x18] sm:$0xff]
    %65 = vst [vmem:[#allocation2 + $0x10] sm:$0xff] 0.0
    %vm66 = vcmask 523264
    %67 = vst.msk [vmem:[#allocation2 + $0x18] sm:$0xff] %vm66, 0.0
    %68 = vst [vmem:[#allocation2 + $0x50] sm:$0xff] 0.0
    %69 = vst.msk [vmem:[#allocation2 + $0x58] sm:$0xff] %vm66, 0.0
    %70 = vst [vmem:[#allocation2 + $0x20] sm:$0xff] 0.0
    %71 = vst.msk [vmem:[#allocation2 + $0x28] sm:$0xff] %vm66, 0.0
    %72 = vst [vmem:[#allocation2 + $0x60] sm:$0xff] 0.0
    %73 = vst.msk [vmem:[#allocation2 + $0x68] sm:$0xff] %vm66, 0.0
    %vm78 = vcmask 1040384
    %v79 = vrot.slane %v61, 7
    %v80 = vrot.slane %v62, 7
    %v81 = vsel %vm78, %v79, %v80
    %v82 = vrot.slane %v63, 7
    %v83 = vrot.slane %v64, 7
    %v84 = vsel %vm78, %v82, %v83
    %vm91 = vcmask 523265
    %92 = vst.msk [vmem:[#allocation2 + $0x10] sm:$0xfe] %vm91, %v79
    %93 = vst.msk [vmem:[#allocation2 + $0x20] sm:$0xff] %vm66, %v81
    %vm94 = vcmask 516096
    %95 = vst.msk [vmem:[#allocation2 + $0x30] sm:$0x1] %vm94, %v80
    %96 = vst.msk [vmem:[#allocation2 + $0x50] sm:$0xfe] %vm91, %v82
    %97 = vst.msk [vmem:[#allocation2 + $0x60] sm:$0xff] %vm66, %v84
    %98 = vst.msk [vmem:[#allocation2 + $0x70] sm:$0x1] %vm94, %v83
    %99 = vrot.lane.b32.xlu0 %v61, 64
    %v100 = vpop.permute.xlu0 %99
    %101 = vrot.lane.b32.xlu0 %v62, 64
    %v102 = vpop.permute.xlu0 %101
    %103 = vrot.lane.b32.xlu0 %v63, 64
    %v104 = vpop.permute.xlu0 %103
    %105 = vrot.lane.b32.xlu0 %v64, 64
    %v106 = vpop.permute.xlu0 %105
    %vm111 = vcmask 1048064
    %112 = vst.msk [vmem:[#allocation2 + $0x10] sm:$0xff] %vm111, %v100
    %113 = vst.msk [vmem:[#allocation2 + $0x20] sm:$0xff] %vm111, %v102
    %114 = vst.msk [vmem:[#allocation2 + $0x50] sm:$0xff] %vm111, %v104
    %115 = vst.msk [vmem:[#allocation2 + $0x60] sm:$0xff] %vm111, %v106
    %vm116 = vcmask 1046528
    %v117 = vrot.slane %v61, 1
    %v118 = vrot.slane %v62, 1
    %v119 = vsel %vm116, %v117, %v118
    %v120 = vrot.slane %v63, 1
    %v121 = vrot.slane %v64, 1
    %v122 = vsel %vm116, %v120, %v121
    %vm129 = vcmask 523271
    %130 = vst.msk [vmem:[#allocation2 + $0x8] sm:$0x80] %vm129, %v117
    %131 = vst.msk [vmem:[#allocation2 + $0x18] sm:$0xff] %vm66, %v119
    %vm132 = vcmask 522240
    %133 = vst.msk [vmem:[#allocation2 + $0x28] sm:$0x7f] %vm132, %v118
    %134 = vst.msk [vmem:[#allocation2 + $0x48] sm:$0x80] %vm129, %v120
    %135 = vst.msk [vmem:[#allocation2 + $0x58] sm:$0xff] %vm66, %v122
    %136 = vst.msk [vmem:[#allocation2 + $0x68] sm:$0x7f] %vm132, %v121
    %v137 = vld [vmem:[#allocation2 + $0x10] sm:$0xff]
    %v138 = vld [vmem:[#allocation2 + $0x18] sm:$0xff]
    %v139 = vld [vmem:[#allocation2 + $0x20] sm:$0xff]
    %v140 = vld [vmem:[#allocation2 + $0x28] sm:$0xff]
    %v141 = vld [vmem:[#allocation2 + $0x50] sm:$0xff]
    %v142 = vld [vmem:[#allocation2 + $0x58] sm:$0xff]
    %v143 = vld [vmem:[#allocation2 + $0x60] sm:$0xff]
    %v144 = vld [vmem:[#allocation2 + $0x68] sm:$0xff]
    %v145 = vld [vmem:[#allocation4] sm:$0xff]
    %v146 = vld [vmem:[#allocation4 + $0x8] sm:$0xff]
    %v147 = vld [vmem:[#allocation4 + $0x10] sm:$0xff]
    %v148 = vld [vmem:[#allocation4 + $0x18] sm:$0xff]
    %v149 = vld [vmem:[#allocation4 + $0x20] sm:$0xff]
    %v150 = vld [vmem:[#allocation4 + $0x28] sm:$0xff]
    %v151 = vld [vmem:[#allocation4 + $0x30] sm:$0xff]
    %v152 = vld [vmem:[#allocation4 + $0x38] sm:$0xff]
    %v153 = vld [vmem:[#allocation4 + $0x40] sm:$0xff]
    %v154 = vld [vmem:[#allocation4 + $0x48] sm:$0xff]
    %v155 = vld [vmem:[#allocation4 + $0x50] sm:$0xff]
    %v156 = vld [vmem:[#allocation4 + $0x58] sm:$0xff]
    %v157 = vld [vmem:[#allocation4 + $0x60] sm:$0xff]
    %v158 = vld [vmem:[#allocation4 + $0x68] sm:$0xff]
    %v159 = vld [vmem:[#allocation4 + $0x70] sm:$0xff]
    %v160 = vld [vmem:[#allocation4 + $0x78] sm:$0xff]
    %v161 = vld [vmem:[#allocation4 + $0x80] sm:$0xff]
    %v162 = vld [vmem:[#allocation4 + $0x88] sm:$0xff]
    %v163 = vld [vmem:[#allocation4 + $0x90] sm:$0xff]
    %v164 = vld [vmem:[#allocation4 + $0x98] sm:$0xff]
    %v165 = vld [vmem:[#allocation4 + $0xa0] sm:$0xff]
    %v166 = vld [vmem:[#allocation4 + $0xa8] sm:$0xff]
    %v167 = vld [vmem:[#allocation4 + $0xb0] sm:$0xff]
    %v168 = vld [vmem:[#allocation4 + $0xb8] sm:$0xff]
    %v170 = vsel %vm66, %v138, 0
    %v173 = vsel %vm66, %v140, 0
    %v176 = vsel %vm66, %v142, 0
    %v179 = vsel %vm66, %v144, 0
    %181 = vmatprep.subr.mxu0 0.0
    %182 = vmatpush1.msra.mxu0 %v160
    %183 = vmatprep.subr.mxu0 0.0
    %184 = vmatpush1.msra.mxu0 %v159
    %185 = vmatprep.subr.mxu0 0.0
    %186 = vmatpush1.msra.mxu0 %v158
    %187 = vmatprep.subr.mxu0 0.0
    %188 = vmatpush1.msra.mxu0 %v157
    %189 = vmatprep.subr.mxu0 0.0
    %190 = vmatpush1.msra.mxu0 %v156
    %191 = vmatprep.subr.mxu0 0.0
    %192 = vmatpush1.msra.mxu0 %v155
    %193 = vmatprep.subr.mxu0 0.0
    %194 = vmatpush1.msra.mxu0 %v154
    %195 = vmatprep.subr.mxu0 0.0
    %196 = vmatpush1.msra.mxu0 %v153
    %197 = vmatprep.subr.mxu0 0.0
    %198 = vmatpush1.msra.mxu0 %v152
    %199 = vmatprep.subr.mxu0 0.0
    %200 = vmatpush1.msra.mxu0 %v151
    %201 = vmatprep.subr.mxu0 0.0
    %202 = vmatpush1.msra.mxu0 %v150
    %203 = vmatprep.subr.mxu0 0.0
    %204 = vmatpush1.msra.mxu0 %v149
    %205 = vmatprep.subr.mxu0 0.0
    %206 = vmatpush1.msra.mxu0 %v148
    %207 = vmatprep.subr.mxu0 0.0
    %208 = vmatpush1.msra.mxu0 %v147
    %209 = vmatprep.subr.mxu0 0.0
    %210 = vmatpush1.msra.mxu0 %v146
    %211 = vmatprep.subr.mxu0 0.0
    %212 = vmatpush1.msra.mxu0 %v145
    %213 = vmatprep.subr.mxu0 0.0
    %214 = vmatpush2.msra.mxu0 0.0
    %215 = vmatprep.subr.mxu0 0.0
    %216 = vmatpush2.msra.mxu0 0.0
    %217 = vmatprep.subr.mxu0 0.0
    %218 = vmatpush2.msra.mxu0 0.0
    %219 = vmatprep.subr.mxu0 0.0
    %220 = vmatpush2.msra.mxu0 0.0
    %221 = vmatprep.subr.mxu0 0.0
    %222 = vmatpush2.msra.mxu0 0.0
    %223 = vmatprep.subr.mxu0 0.0
    %224 = vmatpush2.msra.mxu0 0.0
    %225 = vmatprep.subr.mxu0 0.0
    %226 = vmatpush2.msra.mxu0 0.0
    %227 = vmatprep.subr.mxu0 0.0
    %228 = vmatpush2.msra.mxu0 0.0
    %229 = vmatprep.subr.mxu0 0.0
    %230 = vmatpush2.msra.mxu0 %v168
    %231 = vmatprep.subr.mxu0 0.0
    %232 = vmatpush2.msra.mxu0 %v167
    %233 = vmatprep.subr.mxu0 0.0
    %234 = vmatpush2.msra.mxu0 %v166
    %235 = vmatprep.subr.mxu0 0.0
    %236 = vmatpush2.msra.mxu0 %v165
    %237 = vmatprep.subr.mxu0 0.0
    %238 = vmatpush2.msra.mxu0 %v164
    %239 = vmatprep.subr.mxu0 0.0
    %240 = vmatpush2.msra.mxu0 %v163
    %241 = vmatprep.subr.mxu0 0.0
    %242 = vmatpush2.msra.mxu0 %v162
    %243 = vmatprep.subr.mxu0 0.0
    %244 = vmatpush2.msra.mxu0 %v161
    %245 = vmatprep.mubr.f32.mxu0 %v170
    %246 = vmatmul.mubr.f32.gmra.mxu0 %v137
    %v247 = vpop.f32.mrf.mxu0
    %v248 = vadd.f32 0.0, %v247
    %v249 = vpop.f32.mrf.mxu0
    %250 = vmatprep.mubr.f32.mxu0 %v173
    %251 = vmatmul.mubr.f32.gmra.mxu0 %v139
    %v252 = vpop.f32.mrf.mxu0
    %v253 = vadd.f32 0.0, %v252
    %v254 = vpop.f32.mrf.mxu0
    %255 = vmatprep.mubr.f32.mxu0 %v176
    %256 = vmatmul.mubr.f32.gmra.mxu0 %v141
    %v257 = vpop.f32.mrf.mxu0
    %v258 = vadd.f32 0.0, %v257
    %v259 = vpop.f32.mrf.mxu0
    %260 = vmatprep.mubr.f32.mxu0 %v179
    %261 = vmatmul.mubr.f32.gmra.mxu0 %v143
    %v262 = vpop.f32.mrf.mxu0
    %v263 = vadd.f32 0.0, %v262
    %v264 = vpop.f32.mrf.mxu0
    %265 = vdwg.mxu0
    %v266 = vadd.f32 %v248, %v253
    %v267 = vadd.f32 %v266, %v258
    %v268 = vadd.f32 %v267, %v263
    %v269 = vrot.slane %v268, 4
    %v270 = vadd.f32 %v268, %v269
    %v271 = vrot.slane %v270, 2
    %v272 = vadd.f32 %v270, %v271
    %v273 = vrot.slane %v272, 1
    %v274 = vadd.f32 %v272, %v273
    %v275 = vmul.f32 %v248, %v248
    %v276 = vmul.f32 %v253, %v253
    %v277 = vmul.f32 %v258, %v258
    %v278 = vmul.f32 %v263, %v263
    %v279 = vadd.f32 %v275, %v276
    %v280 = vadd.f32 %v279, %v277
    %v281 = vadd.f32 %v280, %v278
    %v282 = vrot.slane %v281, 4
    %v283 = vadd.f32 %v281, %v282
    %v284 = vrot.slane %v283, 2
    %v285 = vadd.f32 %v283, %v284
    %v286 = vrot.slane %v285, 1
    %v287 = vadd.f32 %v285, %v286
    %v288 = vsel %vm78, %v274, %v287
    %v289 = vld [vmem:[%s7] sm:$0xff]
    %v290 = vld [vmem:[%s7 + $0x8] sm:$0xff]
    %v291 = vld [vmem:[%s7 + $0x10] sm:$0xff]
    %v292 = vld [vmem:[%s7 + $0x18] sm:$0xff]
    %v293 = vld [vmem:[%s7 + $0x20] sm:$0xff]
    %v294 = vld [vmem:[%s7 + $0x28] sm:$0xff]
    %v295 = vld [vmem:[%s7 + $0x30] sm:$0xff]
    %v296 = vld [vmem:[%s7 + $0x38] sm:$0xff]
    %v297 = vld [vmem:[%s7 + $0x40] sm:$0xff]
    %v298 = vld [vmem:[%s7 + $0x48] sm:$0xff]
    %v299 = vld [vmem:[%s7 + $0x50] sm:$0xff]
    %v300 = vld [vmem:[%s7 + $0x58] sm:$0xff]
    %v301 = vld [vmem:[%s7 + $0x60] sm:$0xff]
    %v302 = vld [vmem:[%s7 + $0x68] sm:$0xff]
    %v303 = vld [vmem:[%s7 + $0x70] sm:$0xff]
    %v304 = vld [vmem:[%s7 + $0x78] sm:$0xff]
    %305 = vmatprep.subr.mxu0 0.0
    %306 = vmatpush1.msra.mxu0 %v304
    %307 = vmatprep.subr.mxu0 0.0
    %308 = vmatpush1.msra.mxu0 %v303
    %309 = vmatprep.subr.mxu0 0.0
    %310 = vmatpush1.msra.mxu0 %v302
    %311 = vmatprep.subr.mxu0 0.0
    %312 = vmatpush1.msra.mxu0 %v301
    %313 = vmatprep.subr.mxu0 0.0
    %314 = vmatpush1.msra.mxu0 %v300
    %315 = vmatprep.subr.mxu0 0.0
    %316 = vmatpush1.msra.mxu0 %v299
    %317 = vmatprep.subr.mxu0 0.0
    %318 = vmatpush1.msra.mxu0 %v298
    %319 = vmatprep.subr.mxu0 0.0
    %320 = vmatpush1.msra.mxu0 %v297
    %321 = vmatprep.subr.mxu0 0.0
    %322 = vmatpush1.msra.mxu0 %v296
    %323 = vmatprep.subr.mxu0 0.0
    %324 = vmatpush1.msra.mxu0 %v295
    %325 = vmatprep.subr.mxu0 0.0
    %326 = vmatpush1.msra.mxu0 %v294
    %327 = vmatprep.subr.mxu0 0.0
    %328 = vmatpush1.msra.mxu0 %v293
    %329 = vmatprep.subr.mxu0 0.0
    %330 = vmatpush1.msra.mxu0 %v292
    %331 = vmatprep.subr.mxu0 0.0
    %332 = vmatpush1.msra.mxu0 %v291
    %333 = vmatprep.subr.mxu0 0.0
    %334 = vmatpush1.msra.mxu0 %v290
    %335 = vmatprep.subr.mxu0 0.0
    %336 = vmatpush1.msra.mxu0 %v289
    %337 = vmatprep.subr.mxu0 0.0
    %338 = vmatpush2.msra.mxu0 0.0
    %339 = vmatprep.subr.mxu0 0.0
    %340 = vmatpush2.msra.mxu0 0.0
    %341 = vmatprep.subr.mxu0 0.0
    %342 = vmatpush2.msra.mxu0 0.0
    %343 = vmatprep.subr.mxu0 0.0
    %344 = vmatpush2.msra.mxu0 0.0
    %345 = vmatprep.subr.mxu0 0.0
    %346 = vmatpush2.msra.mxu0 0.0
    %347 = vmatprep.subr.mxu0 0.0
    %348 = vmatpush2.msra.mxu0 0.0
    %349 = vmatprep.subr.mxu0 0.0
    %350 = vmatpush2.msra.mxu0 0.0
    %351 = vmatprep.subr.mxu0 0.0
    %352 = vmatpush2.msra.mxu0 0.0
    %353 = vmatprep.subr.mxu0 0.0
    %354 = vmatpush2.msra.mxu0 0.0
    %355 = vmatprep.subr.mxu0 0.0
    %356 = vmatpush2.msra.mxu0 0.0
    %357 = vmatprep.subr.mxu0 0.0
    %358 = vmatpush2.msra.mxu0 0.0
    %359 = vmatprep.subr.mxu0 0.0
    %360 = vmatpush2.msra.mxu0 0.0
    %361 = vmatprep.subr.mxu0 0.0
    %362 = vmatpush2.msra.mxu0 0.0
    %363 = vmatprep.subr.mxu0 0.0
    %364 = vmatpush2.msra.mxu0 0.0
    %365 = vmatprep.subr.mxu0 0.0
    %366 = vmatpush2.msra.mxu0 0.0
    %367 = vmatprep.subr.mxu0 0.0
    %368 = vmatpush2.msra.mxu0 0.0
    %369 = vmatprep.mubr.f32.mxu0 0.0
    %370 = vmatmul.mubr.f32.gmra.mxu0 %v288
    %v371 = vpop.f32.mrf.mxu0
    %v372 = vadd.f32 0.0, %v371
    %v373 = vpop.f32.mrf.mxu0
    %374 = vdwg.mxu0
    %v375 = vmul.f32 %v372, 0.001953125
    %v376 = vmul.f32 %v375, %v375
    %v378 = vrot.slane %v376, 7
    %v380 = vsub.f32 %v375, %v378
    %v381 = vmax.f32 %v380, 0.0
    %v382 = vld [vmem:[%s3] sm:$0x1]
    %v383 = vadd.f32 %v381, 1e-05
    %v384 = vrsqrt.pop %v383
    %v387 = vunpack.c.l.s4 1966171168
    %v388 = vunpack.c.0.s8 %v387
    %v389 = vlaneseq
    %v390 = vshrl.u32 %v389, 7
    %v391 = vsub.s32 %v388, %v390
    %v392 = vrot.slane %v384, %v391
    %v393 = vcombine.high %v392, %v392
    %v395 = vunpack.c.l.s4 1966171168
    %v396 = vunpack.c.0.s8 %v395
    %v397 = vlaneseq
    %v398 = vshrl.u32 %v397, 7
    %v399 = vsub.s32 %v396, %v398
    %v400 = vrot.slane %v393, %v399
    %v402 = vmul.f32 %v382, %v400
    %v403 = vld [vmem:[%s4] sm:$0x1]
    %v404 = vmul.f32 %v375, %v402
    %v405 = vsub.f32 %v403, %v404
    %v407 = vlaneseq
    %v408 = vshrl.u32 %v407, 7
    %v409 = vsub.s32 0, %v408
    %v410 = vrot.slane %v405, %v409
    %v412 = vsel %vm78, %v402, %v410
    %v413 = vld [vmem:[%s8] sm:$0xff]
    %vm414 = vcmask 64512
    %v416 = vsel %vm414, %v412, 0
    %418 = vmatprep.subr.mxu0 0.0
    %419 = vmatpush1.msra.mxu0 0.0
    %420 = vmatprep.subr.mxu0 0.0
    %421 = vmatpush1.msra.mxu0 0.0
    %422 = vmatprep.subr.mxu0 0.0
    %423 = vmatpush1.msra.mxu0 0.0
    %424 = vmatprep.subr.mxu0 0.0
    %425 = vmatpush1.msra.mxu0 0.0
    %426 = vmatprep.subr.mxu0 0.0
    %427 = vmatpush1.msra.mxu0 0.0
    %428 = vmatprep.subr.mxu0 0.0
    %429 = vmatpush1.msra.mxu0 0.0
    %430 = vmatprep.subr.mxu0 0.0
    %431 = vmatpush1.msra.mxu0 0.0
    %432 = vmatprep.subr.mxu0 0.0
    %433 = vmatpush1.msra.mxu0 0.0
    %434 = vmatprep.subr.mxu0 0.0
    %435 = vmatpush1.msra.mxu0 0.0
    %436 = vmatprep.subr.mxu0 0.0
    %437 = vmatpush1.msra.mxu0 0.0
    %438 = vmatprep.subr.mxu0 0.0
    %439 = vmatpush1.msra.mxu0 0.0
    %440 = vmatprep.subr.mxu0 0.0
    %441 = vmatpush1.msra.mxu0 0.0
    %442 = vmatprep.subr.mxu0 0.0
    %443 = vmatpush1.msra.mxu0 0.0
    %444 = vmatprep.subr.mxu0 0.0
    %445 = vmatpush1.msra.mxu0 0.0
    %446 = vmatprep.subr.mxu0 0.0
    %447 = vmatpush1.msra.mxu0 0.0
    %448 = vmatprep.subr.mxu0 0.0
    %449 = vmatpush1.msra.mxu0 %v413
    %450 = vmatprep.subr.mxu0 0.0
    %451 = vmatpush2.msra.mxu0 0.0
    %452 = vmatprep.subr.mxu0 0.0
    %453 = vmatpush2.msra.mxu0 0.0
    %454 = vmatprep.subr.mxu0 0.0
    %455 = vmatpush2.msra.mxu0 0.0
    %456 = vmatprep.subr.mxu0 0.0
    %457 = vmatpush2.msra.mxu0 0.0
    %458 = vmatprep.subr.mxu0 0.0
    %459 = vmatpush2.msra.mxu0 0.0
    %460 = vmatprep.subr.mxu0 0.0
    %461 = vmatpush2.msra.mxu0 0.0
    %462 = vmatprep.subr.mxu0 0.0
    %463 = vmatpush2.msra.mxu0 0.0
    %464 = vmatprep.subr.mxu0 0.0
    %465 = vmatpush2.msra.mxu0 0.0
    %466 = vmatprep.subr.mxu0 0.0
    %467 = vmatpush2.msra.mxu0 0.0
    %468 = vmatprep.subr.mxu0 0.0
    %469 = vmatpush2.msra.mxu0 0.0
    %470 = vmatprep.subr.mxu0 0.0
    %471 = vmatpush2.msra.mxu0 0.0
    %472 = vmatprep.subr.mxu0 0.0
    %473 = vmatpush2.msra.mxu0 0.0
    %474 = vmatprep.subr.mxu0 0.0
    %475 = vmatpush2.msra.mxu0 0.0
    %476 = vmatprep.subr.mxu0 0.0
    %477 = vmatpush2.msra.mxu0 0.0
    %478 = vmatprep.subr.mxu0 0.0
    %479 = vmatpush2.msra.mxu0 0.0
    %480 = vmatprep.subr.mxu0 0.0
    %481 = vmatpush2.msra.mxu0 0.0
    %482 = vmatprep.mubr.f32.mxu0 0.0
    %483 = vmatmul.mubr.f32.gmra.mxu0 %v416
    %v484 = vpop.f32.mrf.mxu0
    %v485 = vadd.f32 0.0, %v484
    %v486 = vpop.f32.mrf.mxu0
    %487 = vdwg.mxu0
    %v488 = vlaneseq
    %v489 = vshrl.u32 %v488, 7
    %v490 = vsub.s32 0, %v489
    %v491 = vrot.slane %v485, %v490
    %v492 = vmul.f32 %v248, %v491
    %v493 = vmul.f32 %v253, %v491
    %v494 = vmul.f32 %v258, %v491
    %v495 = vmul.f32 %v263, %v491
    %v496 = vlaneseq
    %v497 = vshrl.u32 %v496, 7
    %v498 = vsub.s32 1, %v497
    %v499 = vrot.slane %v485, %v498
    %v500 = vadd.f32 %v492, %v499
    %v501 = vadd.f32 %v493, %v499
    %v502 = vadd.f32 %v494, %v499
    %v503 = vadd.f32 %v495, %v499
    %504 = vst [vmem:[#allocation3 + $0x18] sm:$0xff] 0.0
    %505 = vst [vmem:[#allocation3 + $0x20] sm:$0xff] 0.0
    %506 = vst [vmem:[#allocation3 + $0x28] sm:$0xff] 0.0
    %507 = vst [vmem:[#allocation3 + $0x78] sm:$0xff] 0.0
    %508 = vst [vmem:[#allocation3 + $0x80] sm:$0xff] 0.0
    %509 = vst [vmem:[#allocation3 + $0x88] sm:$0xff] 0.0
    %510 = vst [vmem:[#allocation3 + $0x30] sm:$0xff] 0.0
    %511 = vst [vmem:[#allocation3 + $0x38] sm:$0xff] 0.0
    %512 = vst [vmem:[#allocation3 + $0x40] sm:$0xff] 0.0
    %513 = vst [vmem:[#allocation3 + $0x90] sm:$0xff] 0.0
    %514 = vst [vmem:[#allocation3 + $0x98] sm:$0xff] 0.0
    %515 = vst [vmem:[#allocation3 + $0xa0] sm:$0xff] 0.0
    %v520 = vrot.slane %v500, 7
    %v521 = vrot.slane %v501, 7
    %v522 = vsel %vm78, %v520, %v521
    %v523 = vrot.slane %v502, 7
    %v524 = vrot.slane %v503, 7
    %v525 = vsel %vm78, %v523, %v524
    %532 = vst [vmem:[#allocation3 + $0x18] sm:$0xfe] %v520
    %533 = vst [vmem:[#allocation3 + $0x30] sm:$0xff] %v522
    %534 = vst [vmem:[#allocation3 + $0x48] sm:$0x1] %v521
    %535 = vst [vmem:[#allocation3 + $0x78] sm:$0xfe] %v523
    %536 = vst [vmem:[#allocation3 + $0x90] sm:$0xff] %v525
    %537 = vst [vmem:[#allocation3 + $0xa8] sm:$0x1] %v524
    %538 = vst [vmem:[#allocation3 + $0x20] sm:$0xff] %v500
    %539 = vst [vmem:[#allocation3 + $0x38] sm:$0xff] %v501
    %540 = vst [vmem:[#allocation3 + $0x80] sm:$0xff] %v502
    %541 = vst [vmem:[#allocation3 + $0x98] sm:$0xff] %v503
    %v542 = vrot.slane %v500, 1
    %v543 = vrot.slane %v501, 1
    %v544 = vsel %vm116, %v542, %v543
    %v545 = vrot.slane %v502, 1
    %v546 = vrot.slane %v503, 1
    %v547 = vsel %vm116, %v545, %v546
    %554 = vst [vmem:[#allocation3 + $0x10] sm:$0x80] %v542
    %555 = vst [vmem:[#allocation3 + $0x28] sm:$0xff] %v544
    %556 = vst [vmem:[#allocation3 + $0x40] sm:$0x7f] %v543
    %557 = vst [vmem:[#allocation3 + $0x70] sm:$0x80] %v545
    %558 = vst [vmem:[#allocation3 + $0x88] sm:$0xff] %v547
    %559 = vst [vmem:[#allocation3 + $0xa0] sm:$0x7f] %v546
    %v560 = vld [vmem:[#allocation3 + $0x18] sm:$0xff]
    %v561 = vld [vmem:[#allocation3 + $0x20] sm:$0xff]
    %v562 = vld [vmem:[#allocation3 + $0x28] sm:$0xff]
    %v563 = vld [vmem:[#allocation3 + $0x30] sm:$0xff]
    %v564 = vld [vmem:[#allocation3 + $0x38] sm:$0xff]
    %v565 = vld [vmem:[#allocation3 + $0x40] sm:$0xff]
    %v566 = vld [vmem:[#allocation3 + $0x78] sm:$0xff]
    %v567 = vld [vmem:[#allocation3 + $0x80] sm:$0xff]
    %v568 = vld [vmem:[#allocation3 + $0x88] sm:$0xff]
    %v569 = vld [vmem:[#allocation3 + $0x90] sm:$0xff]
    %v570 = vld [vmem:[#allocation3 + $0x98] sm:$0xff]
    %v571 = vld [vmem:[#allocation3 + $0xa0] sm:$0xff]
    %v572 = vld [vmem:[#allocation7] sm:$0xff]
    %v573 = vld [vmem:[#allocation7 + $0x8] sm:$0xff]
    %v574 = vld [vmem:[#allocation7 + $0x10] sm:$0xff]
    %v575 = vld [vmem:[#allocation7 + $0x18] sm:$0xff]
    %v576 = vld [vmem:[#allocation7 + $0x20] sm:$0xff]
    %v577 = vld [vmem:[#allocation7 + $0x28] sm:$0xff]
    %v578 = vld [vmem:[#allocation7 + $0x30] sm:$0xff]
    %v579 = vld [vmem:[#allocation7 + $0x38] sm:$0xff]
    %v580 = vld [vmem:[#allocation7 + $0x40] sm:$0xff]
    %v581 = vld [vmem:[#allocation7 + $0x48] sm:$0xff]
    %v582 = vld [vmem:[#allocation7 + $0x50] sm:$0xff]
    %v583 = vld [vmem:[#allocation7 + $0x58] sm:$0xff]
    %v584 = vld [vmem:[#allocation7 + $0x60] sm:$0xff]
    %v585 = vld [vmem:[#allocation7 + $0x68] sm:$0xff]
    %v586 = vld [vmem:[#allocation7 + $0x70] sm:$0xff]
    %v587 = vld [vmem:[#allocation7 + $0x78] sm:$0xff]
    %v588 = vld [vmem:[#allocation7 + $0x80] sm:$0xff]
    %v589 = vld [vmem:[#allocation7 + $0x88] sm:$0xff]
    %v590 = vld [vmem:[#allocation7 + $0x90] sm:$0xff]
    %v591 = vld [vmem:[#allocation7 + $0x98] sm:$0xff]
    %v592 = vld [vmem:[#allocation7 + $0xa0] sm:$0xff]
    %v593 = vld [vmem:[#allocation7 + $0xa8] sm:$0xff]
    %v594 = vld [vmem:[#allocation7 + $0xb0] sm:$0xff]
    %v595 = vld [vmem:[#allocation7 + $0xb8] sm:$0xff]
    %v596 = vld [vmem:[#allocation7 + $0xc0] sm:$0xff]
    %v597 = vld [vmem:[#allocation7 + $0xc8] sm:$0xff]
    %v598 = vld [vmem:[#allocation7 + $0xd0] sm:$0xff]
    %v599 = vld [vmem:[#allocation7 + $0xd8] sm:$0xff]
    %v600 = vld [vmem:[#allocation7 + $0xe0] sm:$0xff]
    %v601 = vld [vmem:[#allocation7 + $0xe8] sm:$0xff]
    %v602 = vld [vmem:[#allocation7 + $0xf0] sm:$0xff]
    %v603 = vld [vmem:[#allocation7 + $0xf8] sm:$0xff]
    %v604 = vld [vmem:[#allocation7 + $0x100] sm:$0xff]
    %v605 = vld [vmem:[#allocation7 + $0x108] sm:$0xff]
    %v606 = vld [vmem:[#allocation7 + $0x110] sm:$0xff]
    %v607 = vld [vmem:[#allocation7 + $0x118] sm:$0xff]
    %v608 = vld [vmem:[#allocation7 + $0x120] sm:$0xff]
    %v609 = vld [vmem:[#allocation7 + $0x128] sm:$0xff]
    %v610 = vld [vmem:[#allocation7 + $0x130] sm:$0xff]
    %v611 = vld [vmem:[#allocation7 + $0x138] sm:$0xff]
    %v612 = vld [vmem:[#allocation7 + $0x140] sm:$0xff]
    %v613 = vld [vmem:[#allocation7 + $0x148] sm:$0xff]
    %v614 = vld [vmem:[#allocation7 + $0x150] sm:$0xff]
    %v615 = vld [vmem:[#allocation7 + $0x158] sm:$0xff]
    %v616 = vld [vmem:[#allocation7 + $0x160] sm:$0xff]
    %v617 = vld [vmem:[#allocation7 + $0x168] sm:$0xff]
    %v618 = vld [vmem:[#allocation7 + $0x170] sm:$0xff]
    %v619 = vld [vmem:[#allocation7 + $0x178] sm:$0xff]
    %620 = vmatprep.subr.mxu0 0.0
    %621 = vmatpush1.msra.mxu0 %v587
    %622 = vmatprep.subr.mxu0 0.0
    %623 = vmatpush1.msra.mxu0 %v586
    %624 = vmatprep.subr.mxu0 0.0
    %625 = vmatpush1.msra.mxu0 %v585
    %626 = vmatprep.subr.mxu0 0.0
    %627 = vmatpush1.msra.mxu0 %v584
    %628 = vmatprep.subr.mxu0 0.0
    %629 = vmatpush1.msra.mxu0 %v583
    %630 = vmatprep.subr.mxu0 0.0
    %631 = vmatpush1.msra.mxu0 %v582
    %632 = vmatprep.subr.mxu0 0.0
    %633 = vmatpush1.msra.mxu0 %v581
    %634 = vmatprep.subr.mxu0 0.0
    %635 = vmatpush1.msra.mxu0 %v580
    %636 = vmatprep.subr.mxu0 0.0
    %637 = vmatpush1.msra.mxu0 %v579
    %638 = vmatprep.subr.mxu0 0.0
    %639 = vmatpush1.msra.mxu0 %v578
    %640 = vmatprep.subr.mxu0 0.0
    %641 = vmatpush1.msra.mxu0 %v577
    %642 = vmatprep.subr.mxu0 0.0
    %643 = vmatpush1.msra.mxu0 %v576
    %644 = vmatprep.subr.mxu0 0.0
    %645 = vmatpush1.msra.mxu0 %v575
    %646 = vmatprep.subr.mxu0 0.0
    %647 = vmatpush1.msra.mxu0 %v574
    %648 = vmatprep.subr.mxu0 0.0
    %649 = vmatpush1.msra.mxu0 %v573
    %650 = vmatprep.subr.mxu0 0.0
    %651 = vmatpush1.msra.mxu0 %v572
    %652 = vmatprep.subr.mxu0 0.0
    %653 = vmatpush2.msra.mxu0 %v603
    %654 = vmatprep.subr.mxu0 0.0
    %655 = vmatpush2.msra.mxu0 %v602
    %656 = vmatprep.subr.mxu0 0.0
    %657 = vmatpush2.msra.mxu0 %v601
    %658 = vmatprep.subr.mxu0 0.0
    %659 = vmatpush2.msra.mxu0 %v600
    %660 = vmatprep.subr.mxu0 0.0
    %661 = vmatpush2.msra.mxu0 %v599
    %662 = vmatprep.subr.mxu0 0.0
    %663 = vmatpush2.msra.mxu0 %v598
    %664 = vmatprep.subr.mxu0 0.0
    %665 = vmatpush2.msra.mxu0 %v597
    %666 = vmatprep.subr.mxu0 0.0
    %667 = vmatpush2.msra.mxu0 %v596
    %668 = vmatprep.subr.mxu0 0.0
    %669 = vmatpush2.msra.mxu0 %v595
    %670 = vmatprep.subr.mxu0 0.0
    %671 = vmatpush2.msra.mxu0 %v594
    %672 = vmatprep.subr.mxu0 0.0
    %673 = vmatpush2.msra.mxu0 %v593
    %674 = vmatprep.subr.mxu0 0.0
    %675 = vmatpush2.msra.mxu0 %v592
    %676 = vmatprep.subr.mxu0 0.0
    %677 = vmatpush2.msra.mxu0 %v591
    %678 = vmatprep.subr.mxu0 0.0
    %679 = vmatpush2.msra.mxu0 %v590
    %680 = vmatprep.subr.mxu0 0.0
    %681 = vmatpush2.msra.mxu0 %v589
    %682 = vmatprep.subr.mxu0 0.0
    %683 = vmatpush2.msra.mxu0 %v588
    %684 = vmatprep.mubr.f32.mxu0 %v561
    %685 = vmatmul.mubr.f32.gmra.mxu0 %v560
    %v686 = vpop.f32.mrf.mxu0
    %v687 = vadd.f32 0.0, %v686
    %v688 = vpop.f32.mrf.mxu0
    %689 = vmatprep.mubr.f32.mxu0 %v564
    %690 = vmatmul.mubr.f32.gmra.mxu0 %v563
    %v691 = vpop.f32.mrf.mxu0
    %v692 = vadd.f32 0.0, %v691
    %v693 = vpop.f32.mrf.mxu0
    %694 = vmatprep.mubr.f32.mxu0 %v567
    %695 = vmatmul.mubr.f32.gmra.mxu0 %v566
    %v696 = vpop.f32.mrf.mxu0
    %v697 = vadd.f32 0.0, %v696
    %v698 = vpop.f32.mrf.mxu0
    %699 = vmatprep.mubr.f32.mxu0 %v570
    %700 = vmatmul.mubr.f32.gmra.mxu0 %v569
    %v701 = vpop.f32.mrf.mxu0
    %v702 = vadd.f32 0.0, %v701
    %v703 = vpop.f32.mrf.mxu0
    %704 = vdwg.mxu0
    %705 = vmatprep.subr.mxu0 0.0
    %706 = vmatpush1.msra.mxu0 %v619
    %707 = vmatprep.subr.mxu0 0.0
    %708 = vmatpush1.msra.mxu0 %v618
    %709 = vmatprep.subr.mxu0 0.0
    %710 = vmatpush1.msra.mxu0 %v617
    %711 = vmatprep.subr.mxu0 0.0
    %712 = vmatpush1.msra.mxu0 %v616
    %713 = vmatprep.subr.mxu0 0.0
    %714 = vmatpush1.msra.mxu0 %v615
    %715 = vmatprep.subr.mxu0 0.0
    %716 = vmatpush1.msra.mxu0 %v614
    %717 = vmatprep.subr.mxu0 0.0
    %718 = vmatpush1.msra.mxu0 %v613
    %719 = vmatprep.subr.mxu0 0.0
    %720 = vmatpush1.msra.mxu0 %v612
    %721 = vmatprep.subr.mxu0 0.0
    %722 = vmatpush1.msra.mxu0 %v611
    %723 = vmatprep.subr.mxu0 0.0
    %724 = vmatpush1.msra.mxu0 %v610
    %725 = vmatprep.subr.mxu0 0.0
    %726 = vmatpush1.msra.mxu0 %v609
    %727 = vmatprep.subr.mxu0 0.0
    %728 = vmatpush1.msra.mxu0 %v608
    %729 = vmatprep.subr.mxu0 0.0
    %730 = vmatpush1.msra.mxu0 %v607
    %731 = vmatprep.subr.mxu0 0.0
    %732 = vmatpush1.msra.mxu0 %v606
    %733 = vmatprep.subr.mxu0 0.0
    %734 = vmatpush1.msra.mxu0 %v605
    %735 = vmatprep.subr.mxu0 0.0
    %736 = vmatpush1.msra.mxu0 %v604
    %737 = vmatprep.subr.mxu0 0.0
    %738 = vmatpush2.msra.mxu0 0.0
    %739 = vmatprep.subr.mxu0 0.0
    %740 = vmatpush2.msra.mxu0 0.0
    %741 = vmatprep.subr.mxu0 0.0
    %742 = vmatpush2.msra.mxu0 0.0
    %743 = vmatprep.subr.mxu0 0.0
    %744 = vmatpush2.msra.mxu0 0.0
    %745 = vmatprep.subr.mxu0 0.0
    %746 = vmatpush2.msra.mxu0 0.0
    %747 = vmatprep.subr.mxu0 0.0
    %748 = vmatpush2.msra.mxu0 0.0
    %749 = vmatprep.subr.mxu0 0.0
    %750 = vmatpush2.msra.mxu0 0.0
    %751 = vmatprep.subr.mxu0 0.0
    %752 = vmatpush2.msra.mxu0 0.0
    %753 = vmatprep.subr.mxu0 0.0
    %754 = vmatpush2.msra.mxu0 0.0
    %755 = vmatprep.subr.mxu0 0.0
    %756 = vmatpush2.msra.mxu0 0.0
    %757 = vmatprep.subr.mxu0 0.0
    %758 = vmatpush2.msra.mxu0 0.0
    %759 = vmatprep.subr.mxu0 0.0
    %760 = vmatpush2.msra.mxu0 0.0
    %761 = vmatprep.subr.mxu0 0.0
    %762 = vmatpush2.msra.mxu0 0.0
    %763 = vmatprep.subr.mxu0 0.0
    %764 = vmatpush2.msra.mxu0 0.0
    %765 = vmatprep.subr.mxu0 0.0
    %766 = vmatpush2.msra.mxu0 0.0
    %767 = vmatprep.subr.mxu0 0.0
    %768 = vmatpush2.msra.mxu0 0.0
    %769 = vmatprep.mubr.f32.mxu0 0.0
    %770 = vmatmul.mubr.f32.gmra.mxu0 %v562
    %v771 = vpop.f32.mrf.mxu0
    %v772 = vadd.f32 %v687, %v771
    %v773 = vpop.f32.mrf.mxu0
    %774 = vmatprep.mubr.f32.mxu0 0.0
    %775 = vmatmul.mubr.f32.gmra.mxu0 %v565
    %v776 = vpop.f32.mrf.mxu0
    %v777 = vadd.f32 %v692, %v776
    %v778 = vpop.f32.mrf.mxu0
    %779 = vmatprep.mubr.f32.mxu0 0.0
    %780 = vmatmul.mubr.f32.gmra.mxu0 %v568
    %v781 = vpop.f32.mrf.mxu0
    %v782 = vadd.f32 %v697, %v781
    %v783 = vpop.f32.mrf.mxu0
    %784 = vmatprep.mubr.f32.mxu0 0.0
    %785 = vmatmul.mubr.f32.gmra.mxu0 %v571
    %v786 = vpop.f32.mrf.mxu0
    %v787 = vadd.f32 %v702, %v786
    %v788 = vpop.f32.mrf.mxu0
    %789 = vdwg.mxu0
    %v790 = vadd.f32 %v772, %v777
    %v791 = vadd.f32 %v790, %v782
    %v792 = vadd.f32 %v791, %v787
    %v793 = vrot.slane %v792, 4
    %v794 = vadd.f32 %v792, %v793
    %v795 = vrot.slane %v794, 2
    %v796 = vadd.f32 %v794, %v795
    %v797 = vrot.slane %v796, 1
    %v798 = vadd.f32 %v796, %v797
    %v799 = vmul.f32 %v772, %v772
    %v800 = vmul.f32 %v777, %v777
    %v801 = vmul.f32 %v782, %v782
    %v802 = vmul.f32 %v787, %v787
    %v803 = vadd.f32 %v799, %v800
    %v804 = vadd.f32 %v803, %v801
    %v805 = vadd.f32 %v804, %v802
    %v806 = vrot.slane %v805, 4
    %v807 = vadd.f32 %v805, %v806
    %v808 = vrot.slane %v807, 2
    %v809 = vadd.f32 %v807, %v808
    %v810 = vrot.slane %v809, 1
    %v811 = vadd.f32 %v809, %v810
    %v812 = vsel %vm78, %v798, %v811
    %v813 = vld [vmem:[%s7] sm:$0xff]
    %v814 = vld [vmem:[%s7 + $0x8] sm:$0xff]
    %v815 = vld [vmem:[%s7 + $0x10] sm:$0xff]
    %v816 = vld [vmem:[%s7 + $0x18] sm:$0xff]
    %v817 = vld [vmem:[%s7 + $0x20] sm:$0xff]
    %v818 = vld [vmem:[%s7 + $0x28] sm:$0xff]
    %v819 = vld [vmem:[%s7 + $0x30] sm:$0xff]
    %v820 = vld [vmem:[%s7 + $0x38] sm:$0xff]
    %v821 = vld [vmem:[%s7 + $0x40] sm:$0xff]
    %v822 = vld [vmem:[%s7 + $0x48] sm:$0xff]
    %v823 = vld [vmem:[%s7 + $0x50] sm:$0xff]
    %v824 = vld [vmem:[%s7 + $0x58] sm:$0xff]
    %v825 = vld [vmem:[%s7 + $0x60] sm:$0xff]
    %v826 = vld [vmem:[%s7 + $0x68] sm:$0xff]
    %v827 = vld [vmem:[%s7 + $0x70] sm:$0xff]
    %v828 = vld [vmem:[%s7 + $0x78] sm:$0xff]
    %829 = vmatprep.subr.mxu0 0.0
    %830 = vmatpush1.msra.mxu0 %v828
    %831 = vmatprep.subr.mxu0 0.0
    %832 = vmatpush1.msra.mxu0 %v827
    %833 = vmatprep.subr.mxu0 0.0
    %834 = vmatpush1.msra.mxu0 %v826
    %835 = vmatprep.subr.mxu0 0.0
    %836 = vmatpush1.msra.mxu0 %v825
    %837 = vmatprep.subr.mxu0 0.0
    %838 = vmatpush1.msra.mxu0 %v824
    %839 = vmatprep.subr.mxu0 0.0
    %840 = vmatpush1.msra.mxu0 %v823
    %841 = vmatprep.subr.mxu0 0.0
    %842 = vmatpush1.msra.mxu0 %v822
    %843 = vmatprep.subr.mxu0 0.0
    %844 = vmatpush1.msra.mxu0 %v821
    %845 = vmatprep.subr.mxu0 0.0
    %846 = vmatpush1.msra.mxu0 %v820
    %847 = vmatprep.subr.mxu0 0.0
    %848 = vmatpush1.msra.mxu0 %v819
    %849 = vmatprep.subr.mxu0 0.0
    %850 = vmatpush1.msra.mxu0 %v818
    %851 = vmatprep.subr.mxu0 0.0
    %852 = vmatpush1.msra.mxu0 %v817
    %853 = vmatprep.subr.mxu0 0.0
    %854 = vmatpush1.msra.mxu0 %v816
    %855 = vmatprep.subr.mxu0 0.0
    %856 = vmatpush1.msra.mxu0 %v815
    %857 = vmatprep.subr.mxu0 0.0
    %858 = vmatpush1.msra.mxu0 %v814
    %859 = vmatprep.subr.mxu0 0.0
    %860 = vmatpush1.msra.mxu0 %v813
    %861 = vmatprep.subr.mxu0 0.0
    %862 = vmatpush2.msra.mxu0 0.0
    %863 = vmatprep.subr.mxu0 0.0
    %864 = vmatpush2.msra.mxu0 0.0
    %865 = vmatprep.subr.mxu0 0.0
    %866 = vmatpush2.msra.mxu0 0.0
    %867 = vmatprep.subr.mxu0 0.0
    %868 = vmatpush2.msra.mxu0 0.0
    %869 = vmatprep.subr.mxu0 0.0
    %870 = vmatpush2.msra.mxu0 0.0
    %871 = vmatprep.subr.mxu0 0.0
    %872 = vmatpush2.msra.mxu0 0.0
    %873 = vmatprep.subr.mxu0 0.0
    %874 = vmatpush2.msra.mxu0 0.0
    %875 = vmatprep.subr.mxu0 0.0
    %876 = vmatpush2.msra.mxu0 0.0
    %877 = vmatprep.subr.mxu0 0.0
    %878 = vmatpush2.msra.mxu0 0.0
    %879 = vmatprep.subr.mxu0 0.0
    %880 = vmatpush2.msra.mxu0 0.0
    %881 = vmatprep.subr.mxu0 0.0
    %882 = vmatpush2.msra.mxu0 0.0
    %883 = vmatprep.subr.mxu0 0.0
    %884 = vmatpush2.msra.mxu0 0.0
    %885 = vmatprep.subr.mxu0 0.0
    %886 = vmatpush2.msra.mxu0 0.0
    %887 = vmatprep.subr.mxu0 0.0
    %888 = vmatpush2.msra.mxu0 0.0
    %889 = vmatprep.subr.mxu0 0.0
    %890 = vmatpush2.msra.mxu0 0.0
    %891 = vmatprep.subr.mxu0 0.0
    %892 = vmatpush2.msra.mxu0 0.0
    %893 = vmatprep.mubr.f32.mxu0 0.0
    %894 = vmatmul.mubr.f32.gmra.mxu0 %v812
    %v895 = vpop.f32.mrf.mxu0
    %v896 = vadd.f32 0.0, %v895
    %v897 = vpop.f32.mrf.mxu0
    %898 = vdwg.mxu0
    %v899 = vmul.f32 %v896, 0.001953125
    %v900 = vmul.f32 %v899, %v899
    %v902 = vrot.slane %v900, 7
    %v904 = vsub.f32 %v899, %v902
    %v905 = vmax.f32 %v904, 0.0
    %v906 = vld [vmem:[%s5] sm:$0x1]
    %v907 = vadd.f32 %v905, 1e-05
    %v908 = vrsqrt.pop %v907
    %v911 = vunpack.c.l.s4 1966171168
    %v912 = vunpack.c.0.s8 %v911
    %v913 = vlaneseq
    %v914 = vshrl.u32 %v913, 7
    %v915 = vsub.s32 %v912, %v914
    %v916 = vrot.slane %v908, %v915
    %v917 = vcombine.high %v916, %v916
    %v919 = vunpack.c.l.s4 1966171168
    %v920 = vunpack.c.0.s8 %v919
    %v921 = vlaneseq
    %v922 = vshrl.u32 %v921, 7
    %v923 = vsub.s32 %v920, %v922
    %v924 = vrot.slane %v917, %v923
    %v926 = vmul.f32 %v906, %v924
    %v927 = vld [vmem:[%s6] sm:$0x1]
    %v928 = vmul.f32 %v899, %v926
    %v929 = vsub.f32 %v927, %v928
    %v931 = vlaneseq
    %v932 = vshrl.u32 %v931, 7
    %v933 = vsub.s32 0, %v932
    %v934 = vrot.slane %v929, %v933
    %v936 = vsel %vm78, %v926, %v934
    %v937 = vld [vmem:[%s8] sm:$0xff]
    %v939 = vsel %vm414, %v936, 0
    %941 = vmatprep.subr.mxu0 0.0
    %942 = vmatpush1.msra.mxu0 0.0
    %943 = vmatprep.subr.mxu0 0.0
    %944 = vmatpush1.msra.mxu0 0.0
    %945 = vmatprep.subr.mxu0 0.0
    %946 = vmatpush1.msra.mxu0 0.0
    %947 = vmatprep.subr.mxu0 0.0
    %948 = vmatpush1.msra.mxu0 0.0
    %949 = vmatprep.subr.mxu0 0.0
    %950 = vmatpush1.msra.mxu0 0.0
    %951 = vmatprep.subr.mxu0 0.0
    %952 = vmatpush1.msra.mxu0 0.0
    %953 = vmatprep.subr.mxu0 0.0
    %954 = vmatpush1.msra.mxu0 0.0
    %955 = vmatprep.subr.mxu0 0.0
    %956 = vmatpush1.msra.mxu0 0.0
    %957 = vmatprep.subr.mxu0 0.0
    %958 = vmatpush1.msra.mxu0 0.0
    %959 = vmatprep.subr.mxu0 0.0
    %960 = vmatpush1.msra.mxu0 0.0
    %961 = vmatprep.subr.mxu0 0.0
    %962 = vmatpush1.msra.mxu0 0.0
    %963 = vmatprep.subr.mxu0 0.0
    %964 = vmatpush1.msra.mxu0 0.0
    %965 = vmatprep.subr.mxu0 0.0
    %966 = vmatpush1.msra.mxu0 0.0
    %967 = vmatprep.subr.mxu0 0.0
    %968 = vmatpush1.msra.mxu0 0.0
    %969 = vmatprep.subr.mxu0 0.0
    %970 = vmatpush1.msra.mxu0 0.0
    %971 = vmatprep.subr.mxu0 0.0
    %972 = vmatpush1.msra.mxu0 %v937
    %973 = vmatprep.subr.mxu0 0.0
    %974 = vmatpush2.msra.mxu0 0.0
    %975 = vmatprep.subr.mxu0 0.0
    %976 = vmatpush2.msra.mxu0 0.0
    %977 = vmatprep.subr.mxu0 0.0
    %978 = vmatpush2.msra.mxu0 0.0
    %979 = vmatprep.subr.mxu0 0.0
    %980 = vmatpush2.msra.mxu0 0.0
    %981 = vmatprep.subr.mxu0 0.0
    %982 = vmatpush2.msra.mxu0 0.0
    %983 = vmatprep.subr.mxu0 0.0
    %984 = vmatpush2.msra.mxu0 0.0
    %985 = vmatprep.subr.mxu0 0.0
    %986 = vmatpush2.msra.mxu0 0.0
    %987 = vmatprep.subr.mxu0 0.0
    %988 = vmatpush2.msra.mxu0 0.0
    %989 = vmatprep.subr.mxu0 0.0
    %990 = vmatpush2.msra.mxu0 0.0
    %991 = vmatprep.subr.mxu0 0.0
    %992 = vmatpush2.msra.mxu0 0.0
    %993 = vmatprep.subr.mxu0 0.0
    %994 = vmatpush2.msra.mxu0 0.0
    %995 = vmatprep.subr.mxu0 0.0
    %996 = vmatpush2.msra.mxu0 0.0
    %997 = vmatprep.subr.mxu0 0.0
    %998 = vmatpush2.msra.mxu0 0.0
    %999 = vmatprep.subr.mxu0 0.0
    %1000 = vmatpush2.msra.mxu0 0.0
    %1001 = vmatprep.subr.mxu0 0.0
    %1002 = vmatpush2.msra.mxu0 0.0
    %1003 = vmatprep.subr.mxu0 0.0
    %1004 = vmatpush2.msra.mxu0 0.0
    %1005 = vmatprep.mubr.f32.mxu0 0.0
    %1006 = vmatmul.mubr.f32.gmra.mxu0 %v939
    %v1007 = vpop.f32.mrf.mxu0
    %v1008 = vadd.f32 0.0, %v1007
    %v1009 = vpop.f32.mrf.mxu0
    %1010 = vdwg.mxu0
    %v1011 = vlaneseq
    %v1012 = vshrl.u32 %v1011, 7
    %v1013 = vsub.s32 0, %v1012
    %v1014 = vrot.slane %v1008, %v1013
    %v1015 = vmul.f32 %v772, %v1014
    %v1016 = vmul.f32 %v777, %v1014
    %v1017 = vmul.f32 %v782, %v1014
    %v1018 = vmul.f32 %v787, %v1014
    %v1019 = vlaneseq
    %v1020 = vshrl.u32 %v1019, 7
    %v1021 = vsub.s32 1, %v1020
    %v1022 = vrot.slane %v1008, %v1021
    %v1023 = vadd.f32 %v1015, %v1022
    %v1024 = vadd.f32 %v1016, %v1022
    %v1025 = vadd.f32 %v1017, %v1022
    %v1026 = vadd.f32 %v1018, %v1022
    %vm1027 = vcmp.ge.f32.partialorder %v1023, 0.0
    %vm1028 = vcmp.ge.f32.partialorder %v1024, 0.0
    %vm1029 = vcmp.ge.f32.partialorder %v1025, 0.0
    %vm1030 = vcmp.ge.f32.partialorder %v1026, 0.0
    %v1031 = vmul.f32 %v1023, 0.01
    %v1032 = vmul.f32 %v1024, 0.01
    %v1033 = vmul.f32 %v1025, 0.01
    %v1034 = vmul.f32 %v1026, 0.01
    %v1035 = vsel %vm1027, %v1023, %v1031
    %v1036 = vsel %vm1028, %v1024, %v1032
    %v1037 = vsel %vm1029, %v1025, %v1033
    %v1038 = vsel %vm1030, %v1026, %v1034
    %1039 = vst [vmem:[#allocation9] sm:$0xff] %v1035
    %1040 = vst [vmem:[#allocation9 + $0x8] sm:$0xff] %v1036
    %1041 = vst [vmem:[#allocation9 + $0x10] sm:$0xff] %v1037
    %1042 = vst [vmem:[#allocation9 + $0x18] sm:$0xff] %v1038
    // Predicated region
    $region46: #{tpu_custom_call.1} parent=1 // pred_check
      _
    $region47: #{tpu_custom_call.1} parent=1 // pred_check_branch
      %1044 = sbr.rel (0) target = $region49
    $region48: #{tpu_custom_call.1} parent=1 // pred_region
      %s1046 = ssub.s32 512, 512
      %1047 = vsyncadd [#allocation6], %s1046
      %s1048 = sshll.u32 [#allocation9], 4
      %s1049 = int_to_ptr.vmem [resolvable:$true] %s1048
      %1054 = dma.vmem_to_hbm [thread:$0]  %s1049, 512, %s9, [#allocation6], 128, 128, 8
    $region49: #{tpu_custom_call.1} parent=1 // pred_fallthru
      _
    // Predicated region
    $region50: #{tpu_custom_call.1} parent=1 // pred_check
      _
    $region51: #{tpu_custom_call.1} parent=1 // pred_check_branch
      %1056 = sbr.rel (0) target = $region53
    $region52: #{tpu_custom_call.1} parent=1 // pred_region
      %1057 = dma.done [#allocation6], 512
    $region53: #{tpu_custom_call.1} parent=1 // pred_fallthru
      _
    %1058 = vsyncpa [#allocation5], 1
    %1059 = vsyncpa [#allocation8], 1
    %1060 = vsyncpa [#allocation6], 1

</llo_original>
